<compile_context>
chip_gen: v7x
topology: tpu7x:2x2x1
jax: 0.10.0
libtpu: 0.0.40
codegen_flags: <defaults>
</compile_context>

<pallas_src>
import jax
import jax.numpy as jnp
from jax import lax
from jax.experimental import pallas as pl
from jax.experimental.pallas import tpu as pltpu


def _round_up(x, m):
    return ((x + m - 1) // m) * m


def _cdiv(a, b):
    return -(-a // b)


def _make_sc_loss_kernel(nt, tn, n_valid_last):
    """Kernel factory. nt: row tiles per batch; tn: rows per tile;
    n_valid_last: valid (non-padded) rows in the last tile of each batch."""
    needs_mask = n_valid_last != tn

    def kernel(nodes_ref, centers_ref, labels_ref, out_ref):
        x = nodes_ref[0]          # (tn, D)  bf16 node rows of this tile
        w = centers_ref[...]      # (C, D)   bf16 centers (VMEM-resident)
        y = labels_ref[0]         # (C, 1)   f32 labels of this batch

        # (C, D) x (tn, D)^T -> (C, tn) on the MXU, f32 accumulation.
        # Row-tile TN is the minor/lane axis => lane-dense elementwise math.
        logits = lax.dot_general(
            w, x,
            dimension_numbers=(((1,), (1,)), ((), ())),
            preferred_element_type=jnp.float32)                 # (C, tn)

        # Stable BCE-with-logits; cap softplus terms at 100 to reproduce
        # PyTorch BCELoss' -100 log clamp.  y broadcasts (C,1)->(C,tn).
        t = jnp.log1p(jnp.exp(-jnp.abs(logits)))
        sp_pos = jnp.maximum(logits, 0.0) + t                   # softplus(x)
        sp_neg = sp_pos - logits                                 # softplus(-x)
        bce = (y * jnp.minimum(sp_neg, 100.0)
               + (1.0 - y) * jnp.minimum(sp_pos, 100.0))         # (C, tn)

        if needs_mask:
            n = pl.program_id(1)

            @pl.when(n < nt - 1)
            def _():
                out_ref[...] = jnp.broadcast_to(jnp.sum(bce), out_ref.shape)

            @pl.when(n == nt - 1)
            def _():
                # Zero out contributions from zero-padded rows (lane mask,
                # last tile of each batch only).
                lane = lax.broadcasted_iota(jnp.int32, bce.shape, 1)
                s = jnp.sum(jnp.where(lane < n_valid_last, bce, 0.0))
                out_ref[...] = jnp.broadcast_to(s, out_ref.shape)
        else:
            out_ref[...] = jnp.broadcast_to(jnp.sum(bce), out_ref.shape)

    return kernel


def semantic_context_loss(semantic_nodes, labels, semantic_centers, *,
                          compute_dtype=jnp.bfloat16,
                          nodes_tile_budget_bytes=4 * 1024 * 1024,
                          max_tile_rows=8192):
    """semantic_nodes: (B, N, D); labels: (B, C); semantic_centers: (C, D)."""
    B, N, D = semantic_nodes.shape
    C, Dc = semantic_centers.shape
    assert Dc == D

    # Row tile: multiple of 128 (lane-dense), sized so a single nodes buffer
    # stays within ~4 MiB (~8 MiB double-buffered: safe on v7x's 64 MiB VMEM
    # as well as v5e/v6e), and balanced so the last tile has minimal padding.
    itemsize = jnp.dtype(compute_dtype).itemsize
    tn_cap = max(128, min(max_tile_rows,
                          nodes_tile_budget_bytes // (D * itemsize)))
    nt = _cdiv(N, tn_cap)                 # row tiles per batch
    tn = _round_up(_cdiv(N, nt), 128)     # rows per tile (multiple of 128)
    n_pad = tn * nt
    n_valid_last = N - (nt - 1) * tn      # valid rows in the last tile

    nodes = semantic_nodes.astype(compute_dtype)
    if n_pad != N:
        nodes = jnp.pad(nodes, ((0, 0), (0, n_pad - N), (0, 0)))
    centers = semantic_centers.astype(compute_dtype)      # (C, D), resident
    labels_col = labels.astype(jnp.float32).reshape(B, C, 1)

    kernel = _make_sc_loss_kernel(nt, tn, n_valid_last)

    partials = pl.pallas_call(
        kernel,
        out_shape=jax.ShapeDtypeStruct((B * nt, 8, 128), jnp.float32),
        grid_spec=pltpu.PrefetchScalarGridSpec(
            num_scalar_prefetch=0,
            grid=(B, nt),
            in_specs=[
                pl.BlockSpec((1, tn, D), lambda b, n: (b, n, 0)),  # node rows
                pl.BlockSpec((C, D), lambda b, n: (0, 0)),         # centers
                pl.BlockSpec((1, C, 1), lambda b, n: (b, 0, 0)),   # labels
            ],
            # Each grid step writes its own partial-sum block -> both axes
            # can be "parallel" (2 TensorCores on v7x).
            out_specs=pl.BlockSpec((1, 8, 128),
                                   lambda b, n: (b * nt + n, 0, 0)),
        ),
        compiler_params=pltpu.CompilerParams(
            dimension_semantics=("parallel", "parallel")),
    )(nodes, centers, labels_col)

    # Tiny final reduction + compile-time mean normalizer (1 / (B*N*C)).
    return jnp.sum(partials[:, 0, 0]) * jnp.float32(1.0 / (B * N * C))


if __name__ == "__main__":
    B, N, C, D = 2, 8, 4, 32   # batch, num_nodes, num_classes, embedding_dim

    key = jax.random.PRNGKey(0)
    k_nodes, k_labels, k_centers = jax.random.split(key, 3)

    semantic_nodes = jax.random.normal(k_nodes, (B, N, D), dtype=jnp.float32)
    labels = (jax.random.uniform(k_labels, (B, C)) > 0.5).astype(jnp.float32)
    # deterministic stand-in for nn.Parameter(torch.randn(num_classes, embedding_dim))
    semantic_centers = jax.random.normal(k_centers, (C, D), dtype=jnp.float32)

    loss = semantic_context_loss(semantic_nodes, labels, semantic_centers)
    loss = jax.block_until_ready(loss)

    # Pure-JAX reference: sigmoid + BCELoss(mean) with the -100 log clamp,
    # written in the equivalent stable logits form, using the same bf16 input
    # cast / f32 accumulation as the kernel.
    logits = jnp.einsum("bnd,cd->bnc",
                        semantic_nodes.astype(jnp.bfloat16),
                        semantic_centers.astype(jnp.bfloat16),
                        preferred_element_type=jnp.float32)
    y = labels[:, None, :]
    t = jnp.log1p(jnp.exp(-jnp.abs(logits)))
    sp_pos = jnp.maximum(logits, 0.0) + t
    sp_neg = sp_pos - logits
    ref = jnp.mean(y * jnp.minimum(sp_neg, 100.0)
                   + (1.0 - y) * jnp.minimum(sp_pos, 100.0))

    assert jnp.allclose(loss, ref, rtol=1e-4, atol=1e-5), (loss, ref)

    print("KERNEL_OK")
</pallas_src>

<mosaic_0001>
module attributes {stable_mosaic.version = 11 : i64} {
  func.func @kernel(%arg0: i32, %arg1: i32, %arg2: memref<1x128x32xbf16, #tpu.memory_space<vmem>>, %arg3: memref<4x32xbf16, #tpu.memory_space<vmem>>, %arg4: memref<1x4x1xf32, #tpu.memory_space<vmem>>, %arg5: memref<1x8x128xf32, #tpu.memory_space<vmem>>) attributes {dimension_semantics = [#tpu.dimension_semantics<parallel>, #tpu.dimension_semantics<parallel>], iteration_bounds = array<i64: 2, 1>, scalar_prefetch = 0 : i64, scratch_operands = 0 : i64, tpu.core_type = #tpu.core_type<tc>, window_params = [{transform_indices = @transform_0, window_bounds = array<i64: 1, 128, 32>}, {pipeline_mode = #tpu.pipeline_mode<synchronous>, transform_indices = @transform_1, window_bounds = array<i64: 4, 32>}, {transform_indices = @transform_2, window_bounds = array<i64: 1, 4, 1>}, {transform_indices = @transform_3, window_bounds = array<i64: 1, 8, 128>}]} {
    %c0 = arith.constant 0 : index
    %c0_0 = arith.constant 0 : index
    %c0_1 = arith.constant 0 : index
    %0 = vector.load %arg2[%c0, %c0_0, %c0_1] : memref<1x128x32xbf16, #tpu.memory_space<vmem>>, vector<1x128x32xbf16>
    %1 = vector.shape_cast %0 : vector<1x128x32xbf16> to vector<128x32xbf16>
    %c0_2 = arith.constant 0 : index
    %c0_3 = arith.constant 0 : index
    %2 = vector.load %arg3[%c0_2, %c0_3] : memref<4x32xbf16, #tpu.memory_space<vmem>>, vector<4x32xbf16>
    %c0_4 = arith.constant 0 : index
    %c0_5 = arith.constant 0 : index
    %c0_6 = arith.constant 0 : index
    %3 = vector.load %arg4[%c0_4, %c0_5, %c0_6] : memref<1x4x1xf32, #tpu.memory_space<vmem>>, vector<1x4x1xf32>
    %4 = vector.shape_cast %3 : vector<1x4x1xf32> to vector<4x1xf32>
    %cst = arith.constant dense<0.000000e+00> : vector<4x128xf32>
    %5 = tpu.matmul %2, %1, %cst {dimension_numbers = #tpu.dot_dimension_numbers<[1], [1], [0], [0], [0, 0, 1, 0], [], []>} : vector<4x32xbf16>, vector<128x32xbf16>, vector<4x128xf32> -> vector<4x128xf32>
    %6 = math.absf %5 : vector<4x128xf32>
    %cst_7 = arith.constant 0.000000e+00 : f32
    %7 = vector.broadcast %cst_7 : f32 to vector<4x128xf32>
    %8 = arith.subf %7, %6 : vector<4x128xf32>
    %9 = math.exp %8 : vector<4x128xf32>
    %10 = math.log1p %9 : vector<4x128xf32>
    %cst_8 = arith.constant 0.000000e+00 : f32
    %11 = vector.broadcast %cst_8 : f32 to vector<4x128xf32>
    %12 = arith.maximumf %5, %11 : vector<4x128xf32>
    %13 = arith.addf %12, %10 : vector<4x128xf32>
    %14 = arith.subf %13, %5 : vector<4x128xf32>
    %cst_9 = arith.constant 1.000000e+02 : f32
    %15 = vector.broadcast %cst_9 : f32 to vector<4x128xf32>
    %16 = arith.minimumf %14, %15 : vector<4x128xf32>
    %17 = vector.broadcast %4 : vector<4x1xf32> to vector<4x128xf32>
    %18 = arith.mulf %17, %16 : vector<4x128xf32>
    %cst_10 = arith.constant 1.000000e+00 : f32
    %19 = vector.broadcast %cst_10 : f32 to vector<4x1xf32>
    %20 = arith.subf %19, %4 : vector<4x1xf32>
    %cst_11 = arith.constant 1.000000e+02 : f32
    %21 = vector.broadcast %cst_11 : f32 to vector<4x128xf32>
    %22 = arith.minimumf %13, %21 : vector<4x128xf32>
    %23 = vector.broadcast %20 : vector<4x1xf32> to vector<4x128xf32>
    %24 = arith.mulf %23, %22 : vector<4x128xf32>
    %25 = arith.addf %18, %24 : vector<4x128xf32>
    %c0_i32 = arith.constant 0 : i32
    %26 = arith.cmpi slt, %arg1, %c0_i32 : i32
    %27 = arith.extui %26 : i1 to i32
    %c0_i32_12 = arith.constant 0 : i32
    %28 = arith.cmpi ne, %27, %c0_i32_12 : i32
    scf.if %28 {
      %32 = vector.shape_cast %25 : vector<4x128xf32> to vector<1x4x128xf32>
      %cst_15 = arith.constant dense<0.000000e+00> : vector<1xf32>
      %33 = vector.multi_reduction <add>, %32, %cst_15 [1, 2] : vector<1x4x128xf32> to vector<1xf32>
      %34 = vector.shape_cast %33 : vector<1xf32> to vector<1x1x1xf32>
      %35 = vector.extract %34[0, 0, 0] : f32 from vector<1x1x1xf32>
      %36 = vector.broadcast %35 : f32 to vector<1x8x128xf32>
      %c0_16 = arith.constant 0 : index
      %c0_17 = arith.constant 0 : index
      %c0_18 = arith.constant 0 : index
      %37 = vector.load %arg5[%c0_16, %c0_17, %c0_18] : memref<1x8x128xf32, #tpu.memory_space<vmem>>, vector<1x8x128xf32>
      tpu.vector_store %arg5[%c0_16, %c0_17, %c0_18], %36 {strides = array<i32>} : memref<1x8x128xf32, #tpu.memory_space<vmem>>, vector<1x8x128xf32>,
    } else {
    }
    %c0_i32_13 = arith.constant 0 : i32
    %29 = arith.cmpi eq, %arg1, %c0_i32_13 : i32
    %30 = arith.extui %29 : i1 to i32
    %c0_i32_14 = arith.constant 0 : i32
    %31 = arith.cmpi ne, %30, %c0_i32_14 : i32
    scf.if %31 {
      %32 = tpu.iota {dimensions = array<i32: 1>} : vector<4x128xi32>
      %c8_i32 = arith.constant 8 : i32
      %33 = vector.broadcast %c8_i32 : i32 to vector<4x128xi32>
      %34 = arith.cmpi slt, %32, %33 : vector<4x128xi32>
      %cst_15 = arith.constant 0.000000e+00 : f32
      %35 = vector.broadcast %cst_15 : f32 to vector<4x128xf32>
      %36 = arith.select %34, %25, %35 : vector<4x128xi1>, vector<4x128xf32>
      %37 = vector.shape_cast %36 : vector<4x128xf32> to vector<1x4x128xf32>
      %cst_16 = arith.constant dense<0.000000e+00> : vector<1xf32>
      %38 = vector.multi_reduction <add>, %37, %cst_16 [1, 2] : vector<1x4x128xf32> to vector<1xf32>
      %39 = vector.shape_cast %38 : vector<1xf32> to vector<1x1x1xf32>
      %40 = vector.extract %39[0, 0, 0] : f32 from vector<1x1x1xf32>
      %41 = vector.broadcast %40 : f32 to vector<1x8x128xf32>
      %c0_17 = arith.constant 0 : index
      %c0_18 = arith.constant 0 : index
      %c0_19 = arith.constant 0 : index
      %42 = vector.load %arg5[%c0_17, %c0_18, %c0_19] : memref<1x8x128xf32, #tpu.memory_space<vmem>>, vector<1x8x128xf32>
      tpu.vector_store %arg5[%c0_17, %c0_18, %c0_19], %41 {strides = array<i32>} : memref<1x8x128xf32, #tpu.memory_space<vmem>>, vector<1x8x128xf32>,
    } else {
    }
    return
  }
  func.func @transform_0(%arg0: i32, %arg1: i32) -> (i32, i32, i32) {
    %c0_i32 = arith.constant 0 : i32
    %c0_i32_0 = arith.constant 0 : i32
    return %arg0, %arg1, %c0_i32 : i32, i32, i32
  }
  func.func @transform_1(%arg0: i32, %arg1: i32) -> (i32, i32) {
    %c0_i32 = arith.constant 0 : i32
    %c0_i32_0 = arith.constant 0 : i32
    %c0_i32_1 = arith.constant 0 : i32
    return %c0_i32, %c0_i32_0 : i32, i32
  }
  func.func @transform_2(%arg0: i32, %arg1: i32) -> (i32, i32, i32) {
    %c0_i32 = arith.constant 0 : i32
    %c0_i32_0 = arith.constant 0 : i32
    %c0_i32_1 = arith.constant 0 : i32
    return %arg0, %c0_i32, %c0_i32_0 : i32, i32, i32
  }
  func.func @transform_3(%arg0: i32, %arg1: i32) -> (i32, i32, i32) {
    %c1_i32 = arith.constant 1 : i32
    %0 = arith.muli %arg0, %c1_i32 : i32
    %1 = arith.addi %0, %arg1 : i32
    %c0_i32 = arith.constant 0 : i32
    %c0_i32_0 = arith.constant 0 : i32
    %c0_i32_1 = arith.constant 0 : i32
    return %1, %c0_i32, %c0_i32_0 : i32, i32, i32
  }
}

</mosaic_0001>

<llo_original>
// kernel: tpu_custom_call.1
$region0: #{tpu_custom_call.1}
  #allocation0 [shape = 'u32[]', space=smem, size = 0x4, offset = 0x4, fixed_abs, tag = 'smem constant byte address 0x4 - core index']
  #allocation1 [shape = 'u32[144,128]{1,0:T(1,128)}', space=vmem, size = 0x12000, scoped, tag = 'internal scratch']
  %s0 = inlined_call_operand.vmem [shape: bf16[2,128,32], index: 0, kind: input, shape index: {}]
  %s1 = inlined_call_operand.vmem [shape: bf16[4,32], index: 1, kind: input, shape index: {}]
  %s2 = inlined_call_operand.vmem [shape: f32[2,4,1], index: 2, kind: input, shape index: {}]
  %s3 = inlined_call_operand.hbm [shape: f32[2,8,128], index: 3, kind: output, shape index: {}]
  %s4 = sld [smem:[#allocation0]]
  $region53: #{tpu_custom_call.1} parent=0
    _
  %s6 = ssub.s32 1, %s4
  %s7 = scalar_select 0, %s6, %s4
  $region1: #{tpu_custom_call.1} parent=0
    #allocation2 [shape = 'u8[8192]{0}', space=vmem, size = 0x2000, scoped, tag = 'output window, operand 0']
    #allocation3 [shape = 's32[2]{0}', space=sflag, size = 0x8, scoped, tag = 'scoped memory for tpu_custom_call.1']
    %8 = vsyncpa [#allocation3], 0
    %s9 = scalar_lea.sflag [#allocation3], 1
    %10 = vsyncpa %s9, 0
    loop: start=0, step=1, limit=4
    $region2: #{tpu_custom_call.1} parent=1 // loop_pre_header
      _
    $region3: #{tpu_custom_call.1} parent=1 // loop_header
      %s12 = sphi 0, %s16
      %p13 = scmp.ge.s32.totalorder %s12, 4
      %s19 = sphi 0, %s31
      %s20 = sphi 0, %s27
      %s21 = sphi 0, %s19
      %s22 = sphi 0, %s20
      %s23 = sphi 0, %s21
      %s24 = sphi 0, %s22
      %s36 = sphi 0, %s38
      %s39 = sphi 0, %s36
      %s40 = sphi 0, %s39
      %s56 = sphi 0, %s40
      %s60 = sphi 0, %s60
      %s62 = sphi 0, %s60
      %s63 = sphi 0, %s62
      %s77 = sphi 0, %s63
      %s83 = sphi 0, %s85
      %s86 = sphi 0, %s83
      %s87 = sphi 0, %s86
      %s103 = sphi 0, %s87
      %s111 = sphi 0, %s113
      %s114 = sphi 0, %s111
      %s115 = sphi 0, %s114
      %s131 = sphi 0, %s115
    $region4: #{tpu_custom_call.1} parent=1 // loop_header_branch
      %15 = sbr.rel (%p13) target = $region8
    $region5: #{tpu_custom_call.1} parent=1 // loop_body
      %s17 = ssub.s32 %s12, 1
      %s18 = ssub.s32 %s12, 2
      %s25 = sadd.s32 1, %s20
      %p26 = scmp.ge.s32.totalorder %s25, 1
      %s27 = scalar_select %p26, 0, %s25
      %s28 = sadd.s32 1, %s19
      %s29 = scalar_select %p26, %s28, %s19
      %p30 = scmp.ge.s32.totalorder %s29, 2
      %s31 = scalar_select %p30, 0, %s29
      %s32 = ssub.s32 %s19, %s31
      %s33 = ssub.s32 %s20, %s27
      %s34 = sor.u32 %s32, %s33
      %p35 = scmp.eq.s32.totalorder %s34, 0
      %s37 = sadd.s32 %s36, 1
      %s38 = scalar_select %p35, %s36, %s37
      %p41 = pneg %p35
      %p42 = scmp.eq.s32.totalorder %s12, 1
      %p43 = por %p41, %p42
      %p44 = scmp.ne.s32.totalorder %s36, %s39
      %p45 = scmp.eq.s32.totalorder %s12, 0
      %p46 = por %p44, %p45
      %p47 = scmp.ne.s32.totalorder %s36, %s39
      %p48 = scmp.eq.s32.totalorder %s17, 1
      %p49 = por %p47, %p48
      %p50 = scmp.ne.s32.totalorder %s39, %s40
      %p51 = scmp.eq.s32.totalorder %s17, 0
      %p52 = por %p50, %p51
      %p53 = scmp.ne.s32.totalorder %s39, %s40
      %p54 = scmp.eq.s32.totalorder %s18, 1
      %p55 = por %p53, %p54
      %p57 = scmp.ne.s32.totalorder %s40, %s56
      %p58 = scmp.eq.s32.totalorder %s18, 0
      %p59 = por %p57, %p58
      %s61 = sadd.s32 %s60, 1
      %p64 = scmp.eq.s32.totalorder %s12, 1
      %p65 = scmp.ne.s32.totalorder %s60, %s62
      %p66 = scmp.eq.s32.totalorder %s12, 0
      %p67 = por %p65, %p66
      %p68 = scmp.ne.s32.totalorder %s60, %s62
      %p69 = scmp.eq.s32.totalorder %s17, 1
      %p70 = por %p68, %p69
      %p71 = scmp.ne.s32.totalorder %s62, %s63
      %p72 = scmp.eq.s32.totalorder %s17, 0
      %p73 = por %p71, %p72
      %p74 = scmp.ne.s32.totalorder %s62, %s63
      %p75 = scmp.eq.s32.totalorder %s18, 1
      %p76 = por %p74, %p75
      %p78 = scmp.ne.s32.totalorder %s63, %s77
      %p79 = scmp.eq.s32.totalorder %s18, 0
      %p80 = por %p78, %p79
      %s81 = ssub.s32 %s19, %s31
      %p82 = scmp.eq.s32.totalorder %s81, 0
      %s84 = sadd.s32 %s83, 1
      %s85 = scalar_select %p82, %s83, %s84
      %p88 = pneg %p82
      %p89 = scmp.eq.s32.totalorder %s12, 1
      %p90 = por %p88, %p89
      %p91 = scmp.ne.s32.totalorder %s83, %s86
      %p92 = scmp.eq.s32.totalorder %s12, 0
      %p93 = por %p91, %p92
      %p94 = scmp.ne.s32.totalorder %s83, %s86
      %p95 = scmp.eq.s32.totalorder %s17, 1
      %p96 = por %p94, %p95
      %p97 = scmp.ne.s32.totalorder %s86, %s87
      %p98 = scmp.eq.s32.totalorder %s17, 0
      %p99 = por %p97, %p98
      %p100 = scmp.ne.s32.totalorder %s86, %s87
      %p101 = scmp.eq.s32.totalorder %s18, 1
      %p102 = por %p100, %p101
      %p104 = scmp.ne.s32.totalorder %s87, %s103
      %p105 = scmp.eq.s32.totalorder %s18, 0
      %p106 = por %p104, %p105
      %s107 = sadd.s32 %s19, %s20
      %s108 = sadd.s32 %s31, %s27
      %s109 = ssub.s32 %s107, %s108
      %p110 = scmp.eq.s32.totalorder %s109, 0
      %s112 = sadd.s32 %s111, 1
      %s113 = scalar_select %p110, %s111, %s112
      %p116 = pneg %p110
      %p117 = scmp.eq.s32.totalorder %s12, 1
      %p118 = por %p116, %p117
      %p119 = scmp.ne.s32.totalorder %s111, %s114
      %p120 = scmp.eq.s32.totalorder %s12, 0
      %p121 = por %p119, %p120
      %p122 = scmp.ne.s32.totalorder %s111, %s114
      %p123 = scmp.eq.s32.totalorder %s17, 1
      %p124 = por %p122, %p123
      %p125 = scmp.ne.s32.totalorder %s114, %s115
      %p126 = scmp.eq.s32.totalorder %s17, 0
      %p127 = por %p125, %p126
      %p128 = scmp.ne.s32.totalorder %s114, %s115
      %p129 = scmp.eq.s32.totalorder %s18, 1
      %p130 = por %p128, %p129
      %p132 = scmp.ne.s32.totalorder %s115, %s131
      %p133 = scmp.eq.s32.totalorder %s18, 0
      %p134 = por %p132, %p133
      %p135 = scmp.le.s32.totalorder 1, %s12
      %p136 = scmp.lt.s32.totalorder %s12, 3
      %p137 = pnand %p135, %p136
      %p138 = pneg %p137
      // Predicated region
      $region9: #{tpu_custom_call.1} parent=5 // pred_check
        _
      $region10: #{tpu_custom_call.1} parent=5 // pred_check_branch
        %140 = sbr.rel (%p137) target = $region12
      $region11: #{tpu_custom_call.1} parent=5 // pred_region
        %s141 = ssub.s32 %s12, 1
        // Predicated region
        $region13: #{tpu_custom_call.1} parent=11 // pred_check
          %p142 = pneg %p73
        $region14: #{tpu_custom_call.1} parent=11 // pred_check_branch
          %144 = sbr.rel (%p142) target = $region16
        $region15: #{tpu_custom_call.1} parent=11 // pred_region
          _
        $region16: #{tpu_custom_call.1} parent=11 // pred_fallthru
          _
      $region12: #{tpu_custom_call.1} parent=5 // pred_fallthru
        _
      %p145 = scmp.lt.s32.totalorder %s12, 2
      // Predicated region
      $region17: #{tpu_custom_call.1} parent=5 // pred_check
        %p146 = pneg %p145
      $region18: #{tpu_custom_call.1} parent=5 // pred_check_branch
        %148 = sbr.rel (%p146) target = $region20
      $region19: #{tpu_custom_call.1} parent=5 // pred_region
        // Predicated region
        $region21: #{tpu_custom_call.1} parent=19 // pred_check
          %p149 = pneg %p46
        $region22: #{tpu_custom_call.1} parent=19 // pred_check_branch
          %151 = sbr.rel (%p149) target = $region24
        $region23: #{tpu_custom_call.1} parent=19 // pred_region
          %s152 = smul.u32 16, %s20
          %p153 = scmp.lt.s32.totalorder %s19, 1
          %s154 = scalar_select %p153, %s19, 1
          %p155 = scmp.lt.s32.totalorder %s152, 15
          %s156 = scalar_select %p155, %s152, 15
          %s157 = smul.addr %s154, 16
          %s158 = sadd.s32 %s156, %s157
          %s159 = smul.addr %s158, 4
          %s160 = scalar_lea.vmem %s0, %s159
          %s161 = smul.u32 16, %s20
        $region24: #{tpu_custom_call.1} parent=19 // pred_fallthru
          _
        // Predicated region
        $region25: #{tpu_custom_call.1} parent=19 // pred_check
          %p162 = pneg %p93
        $region26: #{tpu_custom_call.1} parent=19 // pred_check_branch
          %164 = sbr.rel (%p162) target = $region28
        $region27: #{tpu_custom_call.1} parent=19 // pred_region
          %p165 = scmp.lt.s32.totalorder %s19, 1
          %s166 = scalar_select %p165, %s19, 1
          %s167 = smul.addr %s166, 4
          %s168 = scalar_lea.vmem %s2, %s167
        $region28: #{tpu_custom_call.1} parent=19 // pred_fallthru
          _
      $region20: #{tpu_custom_call.1} parent=5 // pred_fallthru
        _
      %p169 = scmp.le.s32.totalorder 1, %s12
      %p170 = scmp.lt.s32.totalorder %s12, 3
      %p171 = pnand %p169, %p170
      %p172 = pneg %p171
      // Predicated region
      $region29: #{tpu_custom_call.1} parent=5 // pred_check
        _
      $region30: #{tpu_custom_call.1} parent=5 // pred_check_branch
        %174 = sbr.rel (%p171) target = $region32
      $region31: #{tpu_custom_call.1} parent=5 // pred_region
        %s175 = ssub.s32 %s12, 1
        %s176 = smul.u32 16, %s22
        %p177 = scmp.lt.s32.totalorder %s21, 1
        %s178 = scalar_select %p177, %s21, 1
        %p179 = scmp.lt.s32.totalorder %s176, 15
        %s180 = scalar_select %p179, %s176, 15
        %s181 = smul.addr %s178, 16
        %s182 = sadd.s32 %s180, %s181
        %s183 = smul.addr %s182, 4
        %s184 = scalar_lea.vmem %s0, %s183
        %p185 = pneg %p52
        %p186 = pneg %p49
        %p187 = pneg %p73
        %p188 = pneg %p70
        %p189 = scmp.lt.s32.totalorder %s21, 1
        %s190 = scalar_select %p189, %s21, 1
        %s191 = smul.addr %s190, 4
        %s192 = scalar_lea.vmem %s2, %s191
        %p193 = pneg %p99
        %p194 = pneg %p96
        %p195 = pneg %p127
        %p196 = pneg %p124
        %s197 = sand.u32 %s114, 1
        %s198 = scalar_lea.sflag [#allocation3], %s197
        %s199 = sand.u32 %s114, 1
        %s200 = smul.addr %s199, 8
        %s201 = scalar_lea.vmem [#allocation2], %s200
        %s202 = smul.u32 16, %s22
        %p203 = scmp.lt.s32.totalorder %s21, 1
        %s204 = scalar_select %p203, %s21, 1
        %p205 = scmp.lt.s32.totalorder %s202, 15
        %s206 = scalar_select %p205, %s202, 15
        %s207 = smul.addr %s204, 16
        %s208 = sadd.s32 %s206, %s207
        %s209 = smul.addr %s208, 4
        %s210 = scalar_lea.vmem %s0, %s209
        %s211 = smul.u32 16, %s22
        %p212 = scmp.lt.s32.totalorder %s21, 1
        %s213 = scalar_select %p212, %s21, 1
        %s214 = smul.addr %s213, 4
        %s215 = scalar_lea.vmem %s2, %s214
        %s216 = sadd.s32 %s21, %s22
        %v218 = vld [vmem:[%s210] sm:$0xf]
        %v219 = vld [vmem:[%s210 + $0x4] sm:$0xf]
        %v220 = vld [vmem:[%s210 + $0x8] sm:$0xf]
        %v221 = vld [vmem:[%s210 + $0xc] sm:$0xf]
        %v222 = vld [vmem:[%s210 + $0x10] sm:$0xf]
        %v223 = vld [vmem:[%s210 + $0x14] sm:$0xf]
        %v224 = vld [vmem:[%s210 + $0x18] sm:$0xf]
        %v225 = vld [vmem:[%s210 + $0x1c] sm:$0xf]
        %v226 = vld [vmem:[%s210 + $0x20] sm:$0xf]
        %v227 = vld [vmem:[%s210 + $0x24] sm:$0xf]
        %v228 = vld [vmem:[%s210 + $0x28] sm:$0xf]
        %v229 = vld [vmem:[%s210 + $0x2c] sm:$0xf]
        %v230 = vld [vmem:[%s210 + $0x30] sm:$0xf]
        %v231 = vld [vmem:[%s210 + $0x34] sm:$0xf]
        %v232 = vld [vmem:[%s210 + $0x38] sm:$0xf]
        %v233 = vld [vmem:[%s210 + $0x3c] sm:$0xf]
        %v234 = vld [vmem:[%s1] sm:$0x3]
        %v235 = vld [vmem:[%s215] sm:$0xf]
        %v252 = vunpack.c.l.b16 %v218
        %v253 = vunpack.c.l.b16 %v219
        %v254 = vunpack.c.l.b16 %v220
        %v255 = vunpack.c.l.b16 %v221
        %v256 = vunpack.c.l.b16 %v222
        %v257 = vunpack.c.l.b16 %v223
        %v258 = vunpack.c.l.b16 %v224
        %v259 = vunpack.c.l.b16 %v225
        %v260 = vunpack.c.l.b16 %v226
        %v261 = vunpack.c.l.b16 %v227
        %v262 = vunpack.c.l.b16 %v228
        %v263 = vunpack.c.l.b16 %v229
        %v264 = vunpack.c.l.b16 %v230
        %v265 = vunpack.c.l.b16 %v231
        %v266 = vunpack.c.l.b16 %v232
        %v267 = vunpack.c.l.b16 %v233
        %v268 = vpack.c.b16 %v253, %v252
        %v269 = vpack.c.b16 %v255, %v254
        %v270 = vpack.c.b16 %v257, %v256
        %v271 = vpack.c.b16 %v259, %v258
        %v272 = vpack.c.b16 %v261, %v260
        %v273 = vpack.c.b16 %v263, %v262
        %v274 = vpack.c.b16 %v265, %v264
        %v275 = vpack.c.b16 %v267, %v266
        %vm276 = vcmask 261120
        %v278 = vsel %vm276, %v234, 0
        %v281 = vsel %vm276, %v268, 0
        %v284 = vsel %vm276, %v269, 0
        %v287 = vsel %vm276, %v270, 0
        %v290 = vsel %vm276, %v271, 0
        %v293 = vsel %vm276, %v272, 0
        %v296 = vsel %vm276, %v273, 0
        %v299 = vsel %vm276, %v274, 0
        %v302 = vsel %vm276, %v275, 0
        %304 = vmatprep.subr.bf16.mxu0 0
        %305 = vmatpush1.bf16.xpose.msra.mxu0 %v281
        %306 = vmatprep.subr.bf16.mxu0 0
        %307 = vmatpush1.bf16.xpose.msra.mxu0 %v284
        %308 = vmatprep.subr.bf16.mxu0 0
        %309 = vmatpush1.bf16.xpose.msra.mxu0 %v287
        %310 = vmatprep.subr.bf16.mxu0 0
        %311 = vmatpush1.bf16.xpose.msra.mxu0 %v290
        %312 = vmatprep.subr.bf16.mxu0 0
        %313 = vmatpush1.bf16.xpose.msra.mxu0 %v293
        %314 = vmatprep.subr.bf16.mxu0 0
        %315 = vmatpush1.bf16.xpose.msra.mxu0 %v296
        %316 = vmatprep.subr.bf16.mxu0 0
        %317 = vmatpush1.bf16.xpose.msra.mxu0 %v299
        %318 = vmatprep.subr.bf16.mxu0 0
        %319 = vmatpush1.bf16.xpose.msra.mxu0 %v302
        %320 = vmatprep.subr.bf16.mxu0 0
        %321 = vmatpush1.bf16.xpose.msra.mxu0 0
        %322 = vmatprep.subr.bf16.mxu0 0
        %323 = vmatpush1.bf16.xpose.msra.mxu0 0
        %324 = vmatprep.subr.bf16.mxu0 0
        %325 = vmatpush1.bf16.xpose.msra.mxu0 0
        %326 = vmatprep.subr.bf16.mxu0 0
        %327 = vmatpush1.bf16.xpose.msra.mxu0 0
        %328 = vmatprep.subr.bf16.mxu0 0
        %329 = vmatpush1.bf16.xpose.msra.mxu0 0
        %330 = vmatprep.subr.bf16.mxu0 0
        %331 = vmatpush1.bf16.xpose.msra.mxu0 0
        %332 = vmatprep.subr.bf16.mxu0 0
        %333 = vmatpush1.bf16.xpose.msra.mxu0 0
        %334 = vmatprep.subr.bf16.mxu0 0
        %335 = vmatpush1.bf16.xpose.msra.mxu0 0
        %336 = vmatprep.mubr.bf16.mxu0 0
        %337 = vmatmul.mubr.bf16.gmra.mrb[0].mxu0 %v278
        %v338 = vpop.f32.mrb[0].mxu0
        %v339 = vadd.f32 0.0, %v338
        %v340 = vpop.f32.mrb[0].mxu0
        %v341 = vpop.f32.mrb[0].mxu0
        %v342 = vpop.f32.mrb[0].mxu0
        %343 = vdwg.mxu0
        %v344 = vand.u32 2147483647, %v339
        %v345 = vsub.f32 0.0, %v344
        %v346 = vmul.f32 %v345, 1.442695
        %v347 = vpow.pop %v346
        %v348 = vadd.f32 %v347, 1.0
        %v349 = vlog2.pop %v348
        %v350 = vmul.f32 %v349, 0.6931472
        %v351 = vmul.f32 -0.5, %v347
        %v352 = vadd.f32 %v351, 1.0
        %v353 = vmul.f32 %v352, %v347
        %v354 = vand.u32 2147483647, %v347
        %vm355 = vcmp.lt.f32.partialorder %v354, 0.0004427343
        %v356 = vsel %vm355, %v353, %v350
        %v357 = vmax.f32 %v339, 0.0
        %v358 = vadd.f32 %v357, %v356
        %v359 = vsub.f32 %v358, %v339
        %v360 = vmin.f32 %v359, 100.0
        %362 = vset.pattern.permute.xlu0 0
        %363 = vperm.xlu0 %362, %v235
        %v364 = vpop.permute.xlu0 %363
        %v366 = vmul.f32 %v364, %v360
        %v367 = vsub.f32 1.0, %v235
        %v368 = vmin.f32 %v358, 100.0
        %370 = vset.pattern.permute.xlu0 0
        %371 = vperm.xlu0 %370, %v367
        %v372 = vpop.permute.xlu0 %371
        %v374 = vmul.f32 %v372, %v368
        %v375 = vadd.f32 %v366, %v374
        %p376 = scmp.lt.s32.totalorder %s22, 0
        // Predicated region
        $region33: #{tpu_custom_call.1} parent=31 // pred_check
          %p377 = pneg %p376
        $region34: #{tpu_custom_call.1} parent=31 // pred_check_branch
          %379 = sbr.rel (%p377) target = $region36
        $region35: #{tpu_custom_call.1} parent=31 // pred_region
          %vm380 = vcmask 1043456
          %v381 = vsel %vm380, %v375, 0.0
          %382 = vadd.xlane.f32.xlu0 %v381
          %v383 = vpop.xlane.xlu0 %382
          %v384 = vrot.slane %v383, 4
          %v385 = vadd.f32 %v383, %v384
          %v386 = vrot.slane %v385, 2
          %v387 = vadd.f32 %v385, %v386
          %v388 = vrot.slane %v387, 1
          %v389 = vadd.f32 %v387, %v388
          %s390 = vtos %v389
          %v391 = vstv %s390
          %392 = vst [vmem:[%s201] sm:$0xff] %v391
        $region36: #{tpu_custom_call.1} parent=31 // pred_fallthru
          _
        %p393 = scmp.eq.s32.totalorder %s22, 0
        // Predicated region
        $region37: #{tpu_custom_call.1} parent=31 // pred_check
          %p394 = pneg %p393
        $region38: #{tpu_custom_call.1} parent=31 // pred_check_branch
          %396 = sbr.rel (%p394) target = $region40
        $region39: #{tpu_custom_call.1} parent=31 // pred_region
          %v397 = vlaneseq
          %v398 = vand.u32 %v397, 127
          %vm399 = vcmp.lt.s32.totalorder %v398, 8
          %v400 = vsel %vm399, %v375, 0.0
          %vm401 = vcmask 1043456
          %v402 = vsel %vm401, %v400, 0.0
          %403 = vadd.xlane.f32.xlu0 %v402
          %v404 = vpop.xlane.xlu0 %403
          %v405 = vrot.slane %v404, 4
          %v406 = vadd.f32 %v404, %v405
          %v407 = vrot.slane %v406, 2
          %v408 = vadd.f32 %v406, %v407
          %v409 = vrot.slane %v408, 1
          %v410 = vadd.f32 %v408, %v409
          %s411 = vtos %v410
          %v412 = vstv %s411
          %413 = vst [vmem:[%s201] sm:$0xff] %v412
        $region40: #{tpu_custom_call.1} parent=31 // pred_fallthru
          _
        %s414 = sand.u32 %s114, 1
        %s415 = scalar_lea.sflag [#allocation3], %s414
        %s416 = sand.u32 %s114, 1
        %s417 = smul.addr %s416, 8
        %s418 = scalar_lea.vmem [#allocation2], %s417
        // Predicated region
        $region41: #{tpu_custom_call.1} parent=31 // pred_check
          %p419 = pneg %p124
        $region42: #{tpu_custom_call.1} parent=31 // pred_check_branch
          %421 = sbr.rel (%p419) target = $region44
        $region43: #{tpu_custom_call.1} parent=31 // pred_region
          %s422 = sadd.s32 %s21, %s22
          %s424 = ssub.s32 128, 128
          %425 = vsyncadd %s415, %s424
          %s426 = smul.addr %s422, 128
          %s427 = scalar_lea.hbm %s3, %s426
          %s429 = sshll.u32 %s418, 4
          %s430 = int_to_ptr.vmem [resolvable:$true] %s429
          %432 = dma.vmem_to_hbm [thread:$0]  %s430, 128, %s427, %s415
        $region44: #{tpu_custom_call.1} parent=31 // pred_fallthru
          _
      $region32: #{tpu_custom_call.1} parent=5 // pred_fallthru
        _
      %p433 = scmp.le.s32.totalorder 2, %s12
      // Predicated region
      $region45: #{tpu_custom_call.1} parent=5 // pred_check
        %p434 = pneg %p433
      $region46: #{tpu_custom_call.1} parent=5 // pred_check_branch
        %436 = sbr.rel (%p434) target = $region48
      $region47: #{tpu_custom_call.1} parent=5 // pred_region
        %s437 = ssub.s32 %s12, 2
        // Predicated region
        $region49: #{tpu_custom_call.1} parent=47 // pred_check
          %p438 = pneg %p130
        $region50: #{tpu_custom_call.1} parent=47 // pred_check_branch
          %440 = sbr.rel (%p438) target = $region52
        $region51: #{tpu_custom_call.1} parent=47 // pred_region
          %s441 = sand.u32 %s115, 1
          %s442 = scalar_lea.sflag [#allocation3], %s441
          %s443 = sand.u32 %s115, 1
          %s444 = smul.addr %s443, 8
          %s445 = scalar_lea.vmem [#allocation2], %s444
          %446 = dma.done %s442, 128
        $region52: #{tpu_custom_call.1} parent=47 // pred_fallthru
          _
      $region48: #{tpu_custom_call.1} parent=5 // pred_fallthru
        _
    $region6: #{tpu_custom_call.1} parent=1 // loop_footer
      %s16 = sadd.s32 1, %s12
    $region7: #{tpu_custom_call.1} parent=1 // loop_footer_branch
      %11 = sbr.rel target = $region3
    $region8: #{tpu_custom_call.1} parent=1 // loop_exit
      _
    %447 = vsyncpa [#allocation3], 1
    %s448 = scalar_lea.sflag [#allocation3], 1
    %449 = vsyncpa %s448, 1

</llo_original>
